<compile_context>
chip_gen: v7x
topology: tpu7x:2x2x1
jax: 0.10.0
libtpu: 0.0.40
codegen_flags: <defaults>
</compile_context>

<pallas_src>
import functools
import math

import jax
import jax.numpy as jnp
from jax import lax
from jax.experimental import pallas as pl
from jax.experimental.pallas import tpu as pltpu


def _round_up(x, n):
    return ((x + n - 1) // n) * n


# ---------------------------------------------------------------------------
# Pallas kernels
# ---------------------------------------------------------------------------

def _cos_and_margin(x_ref, w_ref, inv_ref, cos_m, sin_m, th, mm):
    """cosine logits (MXU, bf16 operands, f32 acc) + ArcFace margin math.

    x_ref: (tm, K) bf16 inputs tile.  w_ref: (tn, K) bf16 raw weight rows.
    inv_ref: (1, tn) f32 per-class inverse L2 norms (precomputed in wrapper).
    Returns (cos_th, cos_th_m), both (tm, tn) f32.
    """
    cos = lax.dot_general(
        x_ref[...], w_ref[...],
        dimension_numbers=(((1,), (1,)), ((), ())),   # contract last dims -> x @ w.T
        preferred_element_type=jnp.float32,
    )                                                  # (tm, tn) f32
    cos = cos * inv_ref[...]                           # scale output by 1/||w_row||
    cos = jnp.clip(cos, -1.0, 1.0)
    sin = jnp.sqrt(jnp.maximum(1.0 - cos * cos, 0.0))
    cos_th_m = cos * cos_m - sin * sin_m
    # The two PyTorch conditional updates collapse to this single where().
    cos_th_m = jnp.where(cos > th, cos_th_m, cos - mm)
    return cos, cos_th_m


def _arc_nolabel_kernel(x_ref, w_ref, inv_ref, o_ref, *, cos_m, sin_m, th, mm):
    _, cos_th_m = _cos_and_margin(x_ref, w_ref, inv_ref, cos_m, sin_m, th, mm)
    o_ref[...] = cos_th_m


def _arc_labeled_kernel(x_ref, w_ref, inv_ref, lab_ref, o_ref, *,
                        cos_m, sin_m, th, mm, s, tn):
    cos, cos_th_m = _cos_and_margin(x_ref, w_ref, inv_ref, cos_m, sin_m, th, mm)
    # In-kernel one-hot via column iota vs per-row label (no HBM one-hot tensor).
    # NOTE: grid axis 0 is the CLASS-tile axis (outer), axis 1 is the batch-tile axis.
    n_base = pl.program_id(0) * tn
    col = lax.broadcasted_iota(jnp.int32, cos.shape, 1) + n_base
    picked = jnp.where(col == lab_ref[...], cos_th_m, cos)
    o_ref[...] = picked * s


# ---------------------------------------------------------------------------
# Module wrapper (weight prep hoisted out of the forward path)
# ---------------------------------------------------------------------------

class ArcModule:
    """JAX/Pallas equivalent of the PyTorch ArcModule."""

    def __init__(self, weight, s=16.0, m=0.15, *, tm=256, tn=256):
        weight = jnp.asarray(weight, jnp.float32)
        N, K = weight.shape
        self.in_features = K
        self.out_features = N
        self.s = float(s)
        self.m = float(m)
        self.cos_m = math.cos(m)
        self.sin_m = math.sin(m)
        self.th = math.cos(math.pi - m)
        self.mm = math.sin(math.pi - m) * m

        # Lane-dense class tiling (>=128 wide); resolved once here.
        Np = _round_up(max(N, 128), 128)
        tn = min(tn, Np)
        Np = _round_up(Np, tn)
        self.Np, self.tn, self.tm = Np, tn, tm

        # --- hoisted, one-time prep (no per-call HBM copies of the weight) ---
        w_pad = jnp.pad(weight, ((0, Np - N), (0, 0)))
        norm = jnp.sqrt(jnp.sum(w_pad * w_pad, axis=1))            # (Np,) f32
        self.inv_norm = (1.0 / jnp.maximum(norm, 1e-12)).reshape(1, Np)
        self.w_bf16 = w_pad.astype(jnp.bfloat16)                   # (Np, K) bf16

    def __call__(self, inputs, labels=None):
        inputs = jnp.asarray(inputs)
        B, K = inputs.shape
        assert K == self.in_features, (K, self.in_features)
        N, Np, tn = self.out_features, self.Np, self.tn

        # Pad the (small) batch dim; 16 keeps bf16 sublane packing happy.
        Mp = _round_up(B, 16)
        tm = min(self.tm, Mp)
        Mp = _round_up(Mp, tm)
        x_p = jnp.pad(inputs, ((0, Mp - B), (0, 0))).astype(jnp.bfloat16)

        # Class-tile axis OUTER, batch-tile axis INNER: each weight tile is
        # DMA'd once and stays resident while batch tiles stream past.
        grid = (Np // tn, Mp // tm)
        x_spec = pl.BlockSpec((tm, K), lambda j, i: (i, 0))
        w_spec = pl.BlockSpec((tn, K), lambda j, i: (j, 0))
        inv_spec = pl.BlockSpec((1, tn), lambda j, i: (0, j))
        o_spec = pl.BlockSpec((tm, tn), lambda j, i: (i, j))
        cparams = pltpu.CompilerParams(
            dimension_semantics=("parallel", "parallel"))

        if labels is None:
            kernel = functools.partial(
                _arc_nolabel_kernel,
                cos_m=self.cos_m, sin_m=self.sin_m, th=self.th, mm=self.mm)
            out = pl.pallas_call(
                kernel,
                out_shape=jax.ShapeDtypeStruct((Mp, Np), jnp.float32),
                grid=grid,
                in_specs=[x_spec, w_spec, inv_spec],
                out_specs=o_spec,
                compiler_params=cparams,
            )(x_p, self.w_bf16, self.inv_norm)
        else:
            labels = jnp.asarray(labels).reshape(-1).astype(jnp.int32)
            lab_p = jnp.pad(labels, (0, Mp - B), constant_values=-1).reshape(Mp, 1)
            lab_spec = pl.BlockSpec((tm, 1), lambda j, i: (i, 0))
            kernel = functools.partial(
                _arc_labeled_kernel,
                cos_m=self.cos_m, sin_m=self.sin_m, th=self.th, mm=self.mm,
                s=self.s, tn=tn)
            out = pl.pallas_call(
                kernel,
                out_shape=jax.ShapeDtypeStruct((Mp, Np), jnp.float32),
                grid=grid,
                in_specs=[x_spec, w_spec, inv_spec, lab_spec],
                out_specs=o_spec,
                compiler_params=cparams,
            )(x_p, self.w_bf16, self.inv_norm, lab_p)

        # Skip the slice copy entirely when no padding was applied.
        if Mp == B and Np == N:
            return out
        return out[:B, :N]


def init_arc_weight(key, in_features, out_features):
    # nn.init.xavier_normal_
    std = math.sqrt(2.0 / (in_features + out_features))
    return std * jax.random.normal(key, (out_features, in_features), jnp.float32)


# ---------------------------------------------------------------------------
# Driver
# ---------------------------------------------------------------------------

if __name__ == "__main__":
    in_features, out_features = 64, 40
    batch = 6
    S, M = 16.0, 0.15

    key = jax.random.PRNGKey(0)
    kw, kx, kl = jax.random.split(key, 3)
    weight = init_arc_weight(kw, in_features, out_features)
    x = jax.random.normal(kx, (batch, in_features), jnp.float32)
    x = x / jnp.linalg.norm(x, axis=1, keepdims=True)     # typical ArcFace embeddings
    labels = jax.random.randint(kl, (batch,), 0, out_features, dtype=jnp.int32)

    mod = ArcModule(weight, s=S, m=M)                      # weight prep hoisted here
    fwd_labeled = jax.jit(lambda xx, ll: mod(xx, ll))
    fwd_nolabel = jax.jit(lambda xx: mod(xx))

    out = jax.block_until_ready(fwd_labeled(x, labels))
    out_nl = jax.block_until_ready(fwd_nolabel(x))

    # Reference 1: same arithmetic as the kernel (bf16-rounded operands, f32
    # accumulation, output scaled by precomputed per-class inverse norms).
    cos_m_c, sin_m_c = math.cos(M), math.sin(M)
    th_c, mm_c = math.cos(math.pi - M), math.sin(math.pi - M) * M
    inv = 1.0 / jnp.maximum(jnp.linalg.norm(weight, axis=1), 1e-12)
    xb = x.astype(jnp.bfloat16).astype(jnp.float32)
    wb = weight.astype(jnp.bfloat16).astype(jnp.float32)
    cos = jnp.clip(
        jnp.dot(xb, wb.T, precision=jax.lax.Precision.HIGHEST) * inv[None, :],
        -1.0, 1.0)
    sin = jnp.sqrt(jnp.maximum(1.0 - cos * cos, 0.0))
    cthm = jnp.where(cos > th_c, cos * cos_m_c - sin * sin_m_c, cos - mm_c)
    onehot = jax.nn.one_hot(labels, out_features, dtype=jnp.float32)
    ref_lab = (onehot * cthm + (1.0 - onehot) * cos) * S

    # Reference 2: pure-f32 PyTorch-equivalent forward (looser tol: bf16 matmul).
    wn = weight / jnp.maximum(jnp.linalg.norm(weight, axis=1, keepdims=True), 1e-12)
    cos32 = jnp.clip(jnp.dot(x, wn.T, precision=jax.lax.Precision.HIGHEST), -1.0, 1.0)
    sin32 = jnp.sqrt(jnp.maximum(1.0 - cos32 * cos32, 0.0))
    cthm32 = jnp.where(cos32 > th_c, cos32 * cos_m_c - sin32 * sin_m_c, cos32 - mm_c)
    ref32_lab = (onehot * cthm32 + (1.0 - onehot) * cos32) * S

    assert out.shape == (batch, out_features), out.shape
    assert out_nl.shape == (batch, out_features), out_nl.shape
    assert bool(jnp.all(jnp.isfinite(out)))
    assert bool(jnp.all(jnp.isfinite(out_nl)))
    assert float(jnp.max(jnp.abs(out - ref_lab))) < 1e-2
    assert float(jnp.max(jnp.abs(out_nl - cthm))) < 1e-2
    assert float(jnp.max(jnp.abs(out - ref32_lab))) < 0.25      # bf16 operand rounding
    assert float(jnp.max(jnp.abs(out_nl - cthm32))) < 0.05
    print("KERNEL_OK")
</pallas_src>

<mosaic_0001>
module attributes {stable_mosaic.version = 11 : i64} {
  func.func @_arc_labeled_kernel(%arg0: i32, %arg1: i32, %arg2: memref<16x64xbf16, #tpu.memory_space<vmem>>, %arg3: memref<128x64xbf16, #tpu.memory_space<vmem>>, %arg4: memref<1x128xf32, #tpu.memory_space<vmem>>, %arg5: memref<16x1xi32, #tpu.memory_space<vmem>>, %arg6: memref<16x128xf32, #tpu.memory_space<vmem>>) attributes {dimension_semantics = [#tpu.dimension_semantics<parallel>, #tpu.dimension_semantics<parallel>], iteration_bounds = array<i64: 1, 1>, scalar_prefetch = 0 : i64, scratch_operands = 0 : i64, tpu.core_type = #tpu.core_type<tc>, window_params = [{transform_indices = @transform_0, window_bounds = array<i64: 16, 64>}, {transform_indices = @transform_1, window_bounds = array<i64: 128, 64>}, {transform_indices = @transform_2, window_bounds = array<i64: 1, 128>}, {transform_indices = @transform_3, window_bounds = array<i64: 16, 1>}, {transform_indices = @transform_4, window_bounds = array<i64: 16, 128>}]} {
    %c0 = arith.constant 0 : index
    %c0_0 = arith.constant 0 : index
    %0 = vector.load %arg2[%c0, %c0_0] : memref<16x64xbf16, #tpu.memory_space<vmem>>, vector<16x64xbf16>
    %c0_1 = arith.constant 0 : index
    %c0_2 = arith.constant 0 : index
    %1 = vector.load %arg3[%c0_1, %c0_2] : memref<128x64xbf16, #tpu.memory_space<vmem>>, vector<128x64xbf16>
    %cst = arith.constant dense<0.000000e+00> : vector<16x128xf32>
    %2 = tpu.matmul %0, %1, %cst {dimension_numbers = #tpu.dot_dimension_numbers<[1], [1], [0], [0], [0, 0, 1, 0], [], []>} : vector<16x64xbf16>, vector<128x64xbf16>, vector<16x128xf32> -> vector<16x128xf32>
    %c0_3 = arith.constant 0 : index
    %c0_4 = arith.constant 0 : index
    %3 = vector.load %arg4[%c0_3, %c0_4] : memref<1x128xf32, #tpu.memory_space<vmem>>, vector<1x128xf32>
    %4 = vector.broadcast %3 : vector<1x128xf32> to vector<16x128xf32>
    %5 = arith.mulf %2, %4 : vector<16x128xf32>
    %cst_5 = arith.constant -1.000000e+00 : f32
    %cst_6 = arith.constant 1.000000e+00 : f32
    %6 = vector.broadcast %cst_5 : f32 to vector<16x128xf32>
    %7 = arith.maximumf %6, %5 : vector<16x128xf32>
    %8 = vector.broadcast %cst_6 : f32 to vector<16x128xf32>
    %9 = arith.minimumf %8, %7 : vector<16x128xf32>
    %10 = arith.mulf %9, %9 : vector<16x128xf32>
    %cst_7 = arith.constant 1.000000e+00 : f32
    %11 = vector.broadcast %cst_7 : f32 to vector<16x128xf32>
    %12 = arith.subf %11, %10 : vector<16x128xf32>
    %cst_8 = arith.constant 0.000000e+00 : f32
    %13 = vector.broadcast %cst_8 : f32 to vector<16x128xf32>
    %14 = arith.maximumf %12, %13 : vector<16x128xf32>
    %15 = math.sqrt %14 : vector<16x128xf32>
    %cst_9 = arith.constant 0.98877108 : f32
    %16 = vector.broadcast %cst_9 : f32 to vector<16x128xf32>
    %17 = arith.mulf %9, %16 : vector<16x128xf32>
    %cst_10 = arith.constant 0.149438128 : f32
    %18 = vector.broadcast %cst_10 : f32 to vector<16x128xf32>
    %19 = arith.mulf %15, %18 : vector<16x128xf32>
    %20 = arith.subf %17, %19 : vector<16x128xf32>
    %cst_11 = arith.constant -0.98877108 : f32
    %21 = vector.broadcast %cst_11 : f32 to vector<16x128xf32>
    %22 = arith.cmpf ogt, %9, %21 : vector<16x128xf32>
    %cst_12 = arith.constant 0.0224157199 : f32
    %23 = vector.broadcast %cst_12 : f32 to vector<16x128xf32>
    %24 = arith.subf %9, %23 : vector<16x128xf32>
    %25 = arith.select %22, %20, %24 : vector<16x128xi1>, vector<16x128xf32>
    %c128_i32 = arith.constant 128 : i32
    %26 = arith.muli %arg0, %c128_i32 : i32
    %27 = tpu.iota {dimensions = array<i32: 1>} : vector<16x128xi32>
    %28 = vector.broadcast %26 : i32 to vector<16x128xi32>
    %29 = arith.addi %27, %28 : vector<16x128xi32>
    %c0_13 = arith.constant 0 : index
    %c0_14 = arith.constant 0 : index
    %30 = vector.load %arg5[%c0_13, %c0_14] : memref<16x1xi32, #tpu.memory_space<vmem>>, vector<16x1xi32>
    %31 = vector.broadcast %30 : vector<16x1xi32> to vector<16x128xi32>
    %32 = arith.cmpi eq, %29, %31 : vector<16x128xi32>
    %33 = arith.select %32, %25, %9 : vector<16x128xi1>, vector<16x128xf32>
    %cst_15 = arith.constant 1.600000e+01 : f32
    %34 = vector.broadcast %cst_15 : f32 to vector<16x128xf32>
    %35 = arith.mulf %33, %34 : vector<16x128xf32>
    %c0_16 = arith.constant 0 : index
    %c0_17 = arith.constant 0 : index
    %36 = vector.load %arg6[%c0_16, %c0_17] : memref<16x128xf32, #tpu.memory_space<vmem>>, vector<16x128xf32>
    tpu.vector_store %arg6[%c0_16, %c0_17], %35 {strides = array<i32>} : memref<16x128xf32, #tpu.memory_space<vmem>>, vector<16x128xf32>,
    return
  }
  func.func @transform_0(%arg0: i32, %arg1: i32) -> (i32, i32) {
    %c0_i32 = arith.constant 0 : i32
    %c0_i32_0 = arith.constant 0 : i32
    return %arg1, %c0_i32 : i32, i32
  }
  func.func @transform_1(%arg0: i32, %arg1: i32) -> (i32, i32) {
    %c0_i32 = arith.constant 0 : i32
    %c0_i32_0 = arith.constant 0 : i32
    return %arg0, %c0_i32 : i32, i32
  }
  func.func @transform_2(%arg0: i32, %arg1: i32) -> (i32, i32) {
    %c0_i32 = arith.constant 0 : i32
    %c0_i32_0 = arith.constant 0 : i32
    return %c0_i32, %arg0 : i32, i32
  }
  func.func @transform_3(%arg0: i32, %arg1: i32) -> (i32, i32) {
    %c0_i32 = arith.constant 0 : i32
    %c0_i32_0 = arith.constant 0 : i32
    return %arg1, %c0_i32 : i32, i32
  }
  func.func @transform_4(%arg0: i32, %arg1: i32) -> (i32, i32) {
    %c0_i32 = arith.constant 0 : i32
    return %arg1, %arg0 : i32, i32
  }
}

</mosaic_0001>

<llo_original>
// kernel: _lambda_.1
$region0: #{_lambda_.1}
  #allocation0 [shape = 'u32[]', space=smem, size = 0x4, offset = 0x4, fixed_abs, tag = 'smem constant byte address 0x4 - core index']
  #allocation1 [shape = 'u32[144,128]{1,0:T(1,128)}', space=vmem, size = 0x12000, scoped, tag = 'internal scratch']
  %s0 = inlined_call_operand.vmem [shape: bf16[16,64], index: 0, kind: input, shape index: {}]
  %s1 = inlined_call_operand.vmem [shape: bf16[128,64], index: 1, kind: input, shape index: {}]
  %s2 = inlined_call_operand.hbm [shape: f32[1,128], index: 2, kind: input, shape index: {}]
  %s3 = inlined_call_operand.vmem [shape: s32[16,1], index: 3, kind: input, shape index: {}]
  %s4 = inlined_call_operand.vmem [shape: f32[16,128], index: 4, kind: output, shape index: {}]
  %s5 = sld [smem:[#allocation0]]
  $region30: #{_lambda_.1} parent=0
    _
  %s7 = ssub.s32 1, %s5
  %s8 = scalar_select 0, %s7, %s5
  $region1: #{_lambda_.1} parent=0
    #allocation2 [shape = 'u8[512]{0}', space=vmem, size = 0x400, scoped, tag = 'input window, operand 2, single buffered']
    #allocation3 [shape = 's32[1]{0}', space=sflag, size = 0x4, scoped, tag = 'scoped memory for _lambda_.1']
    %9 = vsyncpa [#allocation3], 0
    // Predicated region
    $region2: #{_lambda_.1} parent=1 // pred_check
      _
    $region3: #{_lambda_.1} parent=1 // pred_check_branch
      %11 = sbr.rel (0) target = $region5
    $region4: #{_lambda_.1} parent=1 // pred_region
      _
    $region5: #{_lambda_.1} parent=1 // pred_fallthru
      _
    // Predicated region
    $region6: #{_lambda_.1} parent=1 // pred_check
      _
    $region7: #{_lambda_.1} parent=1 // pred_check_branch
      %13 = sbr.rel (0) target = $region9
    $region8: #{_lambda_.1} parent=1 // pred_region
      _
    $region9: #{_lambda_.1} parent=1 // pred_fallthru
      _
    // Predicated region
    $region10: #{_lambda_.1} parent=1 // pred_check
      _
    $region11: #{_lambda_.1} parent=1 // pred_check_branch
      %15 = sbr.rel (0) target = $region13
    $region12: #{_lambda_.1} parent=1 // pred_region
      %s17 = ssub.s32 16, 16
      %18 = vsyncadd [#allocation3], %s17
      %s20 = sshll.u32 [#allocation2], 4
      %s21 = int_to_ptr.vmem [resolvable:$true] %s20
      %23 = dma.hbm_to_vmem [thread:$0]  %s2, 16, %s21, [#allocation3]
    $region13: #{_lambda_.1} parent=1 // pred_fallthru
      _
    // Predicated region
    $region14: #{_lambda_.1} parent=1 // pred_check
      _
    $region15: #{_lambda_.1} parent=1 // pred_check_branch
      %25 = sbr.rel (0) target = $region17
    $region16: #{_lambda_.1} parent=1 // pred_region
      _
    $region17: #{_lambda_.1} parent=1 // pred_fallthru
      _
    // Predicated region
    $region18: #{_lambda_.1} parent=1 // pred_check
      _
    $region19: #{_lambda_.1} parent=1 // pred_check_branch
      %27 = sbr.rel (0) target = $region21
    $region20: #{_lambda_.1} parent=1 // pred_region
      %28 = dma.done [#allocation3], 16
    $region21: #{_lambda_.1} parent=1 // pred_fallthru
      _
    %v30 = vld [vmem:[%s0] sm:$0xf]
    %v31 = vld [vmem:[%s0 + $0x4] sm:$0xf]
    %v32 = vld [vmem:[%s1] sm:$0xf]
    %v33 = vld [vmem:[%s1 + $0x4] sm:$0xf]
    %v34 = vld [vmem:[%s1 + $0x8] sm:$0xf]
    %v35 = vld [vmem:[%s1 + $0xc] sm:$0xf]
    %v36 = vld [vmem:[%s1 + $0x10] sm:$0xf]
    %v37 = vld [vmem:[%s1 + $0x14] sm:$0xf]
    %v38 = vld [vmem:[%s1 + $0x18] sm:$0xf]
    %v39 = vld [vmem:[%s1 + $0x1c] sm:$0xf]
    %v40 = vld [vmem:[%s1 + $0x20] sm:$0xf]
    %v41 = vld [vmem:[%s1 + $0x24] sm:$0xf]
    %v42 = vld [vmem:[%s1 + $0x28] sm:$0xf]
    %v43 = vld [vmem:[%s1 + $0x2c] sm:$0xf]
    %v44 = vld [vmem:[%s1 + $0x30] sm:$0xf]
    %v45 = vld [vmem:[%s1 + $0x34] sm:$0xf]
    %v46 = vld [vmem:[%s1 + $0x38] sm:$0xf]
    %v47 = vld [vmem:[%s1 + $0x3c] sm:$0xf]
    %v50 = vunpack.c.l.b16 %v30
    %v51 = vunpack.c.l.b16 %v31
    %v52 = vpack.c.b16 %v51, %v50
    %v69 = vunpack.c.l.b16 %v32
    %v70 = vunpack.c.l.b16 %v33
    %v71 = vunpack.c.l.b16 %v34
    %v72 = vunpack.c.l.b16 %v35
    %v73 = vunpack.c.l.b16 %v36
    %v74 = vunpack.c.l.b16 %v37
    %v75 = vunpack.c.l.b16 %v38
    %v76 = vunpack.c.l.b16 %v39
    %v77 = vunpack.c.l.b16 %v40
    %v78 = vunpack.c.l.b16 %v41
    %v79 = vunpack.c.l.b16 %v42
    %v80 = vunpack.c.l.b16 %v43
    %v81 = vunpack.c.l.b16 %v44
    %v82 = vunpack.c.l.b16 %v45
    %v83 = vunpack.c.l.b16 %v46
    %v84 = vunpack.c.l.b16 %v47
    %v85 = vpack.c.b16 %v70, %v69
    %v86 = vpack.c.b16 %v72, %v71
    %v87 = vpack.c.b16 %v74, %v73
    %v88 = vpack.c.b16 %v76, %v75
    %v89 = vpack.c.b16 %v78, %v77
    %v90 = vpack.c.b16 %v80, %v79
    %v91 = vpack.c.b16 %v82, %v81
    %v92 = vpack.c.b16 %v84, %v83
    %vm93 = vcmask 523264
    %v95 = vsel %vm93, %v52, 0
    %v98 = vsel %vm93, %v85, 0
    %v101 = vsel %vm93, %v86, 0
    %v104 = vsel %vm93, %v87, 0
    %v107 = vsel %vm93, %v88, 0
    %v110 = vsel %vm93, %v89, 0
    %v113 = vsel %vm93, %v90, 0
    %v116 = vsel %vm93, %v91, 0
    %v119 = vsel %vm93, %v92, 0
    %121 = vmatprep.subr.bf16.mxu0 0
    %122 = vmatpush1.bf16.xpose.msra.mxu0 %v98
    %123 = vmatprep.subr.bf16.mxu0 0
    %124 = vmatpush1.bf16.xpose.msra.mxu0 %v101
    %125 = vmatprep.subr.bf16.mxu0 0
    %126 = vmatpush1.bf16.xpose.msra.mxu0 %v104
    %127 = vmatprep.subr.bf16.mxu0 0
    %128 = vmatpush1.bf16.xpose.msra.mxu0 %v107
    %129 = vmatprep.subr.bf16.mxu0 0
    %130 = vmatpush1.bf16.xpose.msra.mxu0 %v110
    %131 = vmatprep.subr.bf16.mxu0 0
    %132 = vmatpush1.bf16.xpose.msra.mxu0 %v113
    %133 = vmatprep.subr.bf16.mxu0 0
    %134 = vmatpush1.bf16.xpose.msra.mxu0 %v116
    %135 = vmatprep.subr.bf16.mxu0 0
    %136 = vmatpush1.bf16.xpose.msra.mxu0 %v119
    %137 = vmatprep.subr.bf16.mxu0 0
    %138 = vmatpush1.bf16.xpose.msra.mxu0 0
    %139 = vmatprep.subr.bf16.mxu0 0
    %140 = vmatpush1.bf16.xpose.msra.mxu0 0
    %141 = vmatprep.subr.bf16.mxu0 0
    %142 = vmatpush1.bf16.xpose.msra.mxu0 0
    %143 = vmatprep.subr.bf16.mxu0 0
    %144 = vmatpush1.bf16.xpose.msra.mxu0 0
    %145 = vmatprep.subr.bf16.mxu0 0
    %146 = vmatpush1.bf16.xpose.msra.mxu0 0
    %147 = vmatprep.subr.bf16.mxu0 0
    %148 = vmatpush1.bf16.xpose.msra.mxu0 0
    %149 = vmatprep.subr.bf16.mxu0 0
    %150 = vmatpush1.bf16.xpose.msra.mxu0 0
    %151 = vmatprep.subr.bf16.mxu0 0
    %152 = vmatpush1.bf16.xpose.msra.mxu0 0
    %153 = vmatprep.mubr.bf16.mxu0 0
    %154 = vmatmul.mubr.bf16.gmra.mrb[0].mxu0 %v95
    %v155 = vpop.f32.mrb[0].mxu0
    %v156 = vadd.f32 0.0, %v155
    %v157 = vpop.f32.mrb[0].mxu0
    %v158 = vpop.f32.mrb[0].mxu0
    %v159 = vadd.f32 0.0, %v158
    %v160 = vpop.f32.mrb[0].mxu0
    %161 = vdwg.mxu0
    %v162 = vld [vmem:[#allocation2] sm:$0x1]
    %v164 = vlaneseq
    %v165 = vshrl.u32 %v164, 7
    %v166 = vsub.s32 0, %v165
    %v167 = vrot.slane %v162, %v166
    %v169 = vmul.f32 %v156, %v167
    %v170 = vmul.f32 %v159, %v167
    %v171 = vmax.f32 %v169, -1.0
    %v172 = vmax.f32 %v170, -1.0
    %v173 = vmin.f32 %v171, 1.0
    %v174 = vmin.f32 %v172, 1.0
    %v175 = vmul.f32 %v173, %v173
    %v176 = vmul.f32 %v174, %v174
    %v177 = vsub.f32 1.0, %v175
    %v178 = vsub.f32 1.0, %v176
    %v179 = vmax.f32 %v177, 0.0
    %v180 = vmax.f32 %v178, 0.0
    %v181 = vrsqrt.pop %v179
    %v182 = vmul.f32 %v179, %v181
    %vm183 = vcmp.eq.f32.partialorder %v179, inf
    %v184 = vsel %vm183, %v179, %v182
    %vm185 = vcmp.eq.f32.partialorder %v179, 0.0
    %v186 = vand.u32 %v179, 2147483648
    %v187 = vsel %vm185, %v186, %v184
    %v188 = vrsqrt.pop %v180
    %v189 = vmul.f32 %v180, %v188
    %vm190 = vcmp.eq.f32.partialorder %v180, inf
    %v191 = vsel %vm190, %v180, %v189
    %vm192 = vcmp.eq.f32.partialorder %v180, 0.0
    %v193 = vand.u32 %v180, 2147483648
    %v194 = vsel %vm192, %v193, %v191
    %v195 = vmul.f32 %v173, 0.9887711
    %v196 = vmul.f32 %v174, 0.9887711
    %v197 = vmul.f32 %v187, 0.14943813
    %v198 = vmul.f32 %v194, 0.14943813
    %v199 = vsub.f32 %v195, %v197
    %v200 = vsub.f32 %v196, %v198
    %vm201 = vcmp.gt.f32.partialorder %v173, -0.9887711
    %vm202 = vcmp.gt.f32.partialorder %v174, -0.9887711
    %v203 = vsub.f32 %v173, 0.02241572
    %v204 = vsub.f32 %v174, 0.02241572
    %v205 = vsel %vm201, %v199, %v203
    %v206 = vsel %vm202, %v200, %v204
    %s207 = smul.u32 0, 128
    %v208 = vlaneseq
    %v209 = vand.u32 %v208, 127
    %v210 = vstv %s207
    %v211 = vadd.s32 %v209, %v210
    %v212 = vld [vmem:[%s3] sm:$0xff]
    %v213 = vld [vmem:[%s3 + $0x8] sm:$0xff]
    %214 = vset.pattern.permute.xlu0 0
    %215 = vperm.xlu0 %214, %v212
    %v216 = vpop.permute.xlu0 %215
    %217 = vset.pattern.permute.xlu0 0
    %218 = vperm.xlu0 %217, %v213
    %v219 = vpop.permute.xlu0 %218
    %vm220 = vcmp.eq.s32.totalorder %v211, %v216
    %vm221 = vcmp.eq.s32.totalorder %v211, %v219
    %v222 = vsel %vm220, %v205, %v173
    %v223 = vsel %vm221, %v206, %v174
    %v224 = vmul.f32 %v222, 16.0
    %v225 = vmul.f32 %v223, 16.0
    %226 = vst [vmem:[%s4] sm:$0xff] %v224
    %227 = vst [vmem:[%s4 + $0x8] sm:$0xff] %v225
    // Predicated region
    $region22: #{_lambda_.1} parent=1 // pred_check
      _
    $region23: #{_lambda_.1} parent=1 // pred_check_branch
      %229 = sbr.rel (0) target = $region25
    $region24: #{_lambda_.1} parent=1 // pred_region
      _
    $region25: #{_lambda_.1} parent=1 // pred_fallthru
      _
    // Predicated region
    $region26: #{_lambda_.1} parent=1 // pred_check
      _
    $region27: #{_lambda_.1} parent=1 // pred_check_branch
      %231 = sbr.rel (0) target = $region29
    $region28: #{_lambda_.1} parent=1 // pred_region
      _
    $region29: #{_lambda_.1} parent=1 // pred_fallthru
      _
    %232 = vsyncpa [#allocation3], 1

</llo_original>
